<compile_context>
chip_gen: v7x
topology: tpu7x:2x2x1
jax: 0.10.0
libtpu: 0.0.40
codegen_flags: <defaults>
</compile_context>

<pallas_src>
import functools

import jax
import jax.numpy as jnp
from jax.experimental import pallas as pl
from jax.experimental.pallas import tpu as pltpu

EPS = 1e-8


# -----------------------------------------------------------------------------
# Single fused kernel.  grid=(bs // G,); each program handles G graphs:
#   - step 0: zero accumulators + full lane-dense edge SSE (edge blocks are
#     constant-index, so they are DMA'd once and stay resident)
#   - every step: node-MSE partial + raw overlap partial for its G graphs
#   - last step: combine with precomputed reciprocals and alpha/beta/gamma
# acc_ref (SMEM scratch) slots: [0] node SSE, [1] raw overlap sum, [2] edge SSE
# -----------------------------------------------------------------------------
def _fused_loss_kernel(x_ref, y_ref, ea_ref, ey_ref, out_ref, acc_ref, *,
                       n_modules, n_graph_blocks,
                       inv_nodes, inv_edges, inv_overlap,
                       alpha, beta, gamma):
    i = pl.program_id(0)

    @pl.when(i == 0)
    def _():
        acc_ref[0] = jnp.float32(0.0)
        acc_ref[1] = jnp.float32(0.0)
        out_ref[0] = jnp.float32(0.0)
        # ---- edge loss, lane-dense (edges on lanes, channels on sublanes) ----
        a = ea_ref[...].astype(jnp.float32)              # (2*M, E)
        b = ey_ref[...].astype(jnp.float32)              # (2, E)
        d = a - jnp.tile(b, (n_modules, 1))              # broadcast in VMEM only
        acc_ref[2] = jnp.sum(d * d)

    xg = x_ref[...].astype(jnp.float32)                  # (G, n, 2)  post-DMA cast
    yg = y_ref[...].astype(jnp.float32)                  # (G, n, 6)

    # ---- fused node-MSE partial (x vs y[:, :, :2]) ----
    dn = xg - yg[:, :, 0:2]
    acc_ref[0] += jnp.sum(dn * dn)

    # ---- predicted bboxes for all G graphs of this block ----
    pos = xg + yg[:, :, 2:4]                             # pred_pos_norm
    half = yg[:, :, 4:6] * 0.5
    lt = pos - half                                      # (G, n, 2) left-top
    rb = pos + half                                      # (G, n, 2) right-bottom

    # One (G,n,4)->(G,4,n) transpose instead of per-column transposes.
    coords = jnp.concatenate([lt, rb], axis=2)           # (G, n, 4)
    coords_t = jnp.transpose(coords, (0, 2, 1))          # (G, 4, n)

    x1, y1 = lt[:, :, 0:1], lt[:, :, 1:2]                # (G, n, 1)
    x2, y2 = rb[:, :, 0:1], rb[:, :, 1:2]
    x1t, y1t = coords_t[:, 0:1, :], coords_t[:, 1:2, :]  # (G, 1, n)
    x2t, y2t = coords_t[:, 2:3, :], coords_t[:, 3:4, :]

    iw = jnp.maximum(jnp.minimum(x2, x2t) - jnp.maximum(x1, x1t), 0.0)
    ih = jnp.maximum(jnp.minimum(y2, y2t) - jnp.maximum(y1, y1t), 0.0)
    inter = iw * ih                                      # (G, n, n)

    w = x2 - x1                                          # (G, n, 1)
    h = y2 - y1
    area = w * h                                         # (G, n, 1)
    area_t = (x2t - x1t) * (y2t - y1t)                   # (G, 1, n)
    union = area + area_t - inter
    # approx reciprocal -> EUP slot; leaves the VPU slot for the multiply.
    iou = inter * pl.reciprocal(union + EPS, approx=True)
    total = jnp.sum(iou)

    # Exact diagonal (self-IoU) removed analytically: O(G*n) instead of (n,n)
    # iotas + select.  Bit-identical to the matrix diagonal (same operands feed
    # the same approx reciprocal), valid for any sign of width/height.
    inter_d = jnp.maximum(w, 0.0) * jnp.maximum(h, 0.0)
    union_d = area + area - inter_d
    diag = inter_d * pl.reciprocal(union_d + EPS, approx=True)

    # Raw sum only; normalization hoisted to the final combine.
    acc_ref[1] += total - jnp.sum(diag)

    @pl.when(i == n_graph_blocks - 1)
    def _():
        loss_nodes = acc_ref[0] * inv_nodes
        loss_overlap = acc_ref[1] * inv_overlap
        loss_edges = acc_ref[2] * inv_edges
        out_ref[0] = (alpha * loss_nodes + beta * loss_edges
                      + gamma * loss_overlap)


# -----------------------------------------------------------------------------
# LossFunc forward (wrapper glue + fused Pallas hot path)
# -----------------------------------------------------------------------------
def loss_func(x, y, edge_attr, edge_y, alpha, beta, gamma):
    bs, n, _ = x.shape
    n_edges, m2 = edge_attr.shape
    n_modules = m2 // 2
    assert edge_y.shape == (n_edges, 2)

    # Lane-dense edge layout: edges map to lanes, channels to sublanes.
    # (wrapper-side layout plumbing; removes ~20x vreg/VMEM padding in-kernel)
    ea_t = jnp.transpose(edge_attr)      # (2*M, E)
    ey_t = jnp.transpose(edge_y)         # (2, E)

    # Graphs per grid step: as many as fit a conservative VMEM budget for the
    # padded (G, n, n) IoU temporaries (safe for v5e/v6e/v7x default scoped
    # VMEM).  Pick a divisor of bs so there is no tail block to mask.
    pad_sub = -(-n // 8) * 8
    pad_lane = -(-n // 128) * 128
    per_graph_bytes = 6 * pad_sub * pad_lane * 4         # ~6 live (n,n) f32 temps
    g_cap = max(1, (6 * 1024 * 1024) // per_graph_bytes)
    G = 1
    for d in range(1, min(bs, g_cap) + 1):
        if bs % d == 0:
            G = d
    n_graph_blocks = bs // G

    kernel = functools.partial(
        _fused_loss_kernel,
        n_modules=n_modules,
        n_graph_blocks=n_graph_blocks,
        inv_nodes=1.0 / float(bs * n * 2),                       # node MSE
        inv_edges=1.0 / float(n_edges * m2),                     # == mean over modules
        inv_overlap=1.0 / ((float(n * n - n) + EPS) * float(bs)),  # per-graph norm + mean
        alpha=float(alpha), beta=float(beta), gamma=float(gamma))

    out = pl.pallas_call(
        kernel,
        out_shape=jax.ShapeDtypeStruct((1,), jnp.float32),
        grid=(n_graph_blocks,),
        in_specs=[
            pl.BlockSpec((G, n, 2), lambda i: (i, 0, 0)),
            pl.BlockSpec((G, n, 6), lambda i: (i, 0, 0)),
            # Edge slabs: whole array, constant block index -> DMA'd once,
            # resident across the (usually single-step) grid.
            pl.BlockSpec((m2, n_edges), lambda i: (0, 0)),
            pl.BlockSpec((2, n_edges), lambda i: (0, 0)),
        ],
        out_specs=pl.BlockSpec(memory_space=pltpu.MemorySpace.SMEM),
        scratch_shapes=[pltpu.SMEM((3,), jnp.float32)],
        # Accumulators carried across the graph axis -> reduction axis.
        compiler_params=pltpu.CompilerParams(
            dimension_semantics=("arbitrary",)),
    )(x, y, ea_t, ey_t)
    return out[0]


# -----------------------------------------------------------------------------
# Pure-JAX reference (same math) for a correctness check.
# -----------------------------------------------------------------------------
def _reference_loss(x, y, edge_attr, edge_y, alpha, beta, gamma):
    bs, n, _ = x.shape
    xf = x.reshape(-1, 2)
    yf = y.reshape(-1, 6)
    loss_nodes = jnp.mean((xf - yf[:, :2]) ** 2)

    m = edge_attr.shape[1] // 2
    loss_edges = sum(
        jnp.mean((edge_attr[:, 2 * i:2 * i + 2] - edge_y) ** 2) for i in range(m)
    ) / m

    overlaps = []
    for i in range(bs):
        pos = x[i] + y[i][:, 2:4]
        half = y[i][:, 4:6] / 2
        lt, rb = pos - half, pos + half
        x1, y1 = lt[:, 0:1], lt[:, 1:2]
        x2, y2 = rb[:, 0:1], rb[:, 1:2]
        iw = jnp.maximum(jnp.minimum(x2, x2.T) - jnp.maximum(x1, x1.T), 0.0)
        ih = jnp.maximum(jnp.minimum(y2, y2.T) - jnp.maximum(y1, y1.T), 0.0)
        inter = iw * ih
        area = (x2 - x1) * (y2 - y1)
        iou = inter / (area + area.T - inter + EPS)
        iou = iou - jnp.diag(jnp.diag(iou))
        overlaps.append(jnp.sum(iou) / (n * n - n + EPS))
    loss_overlap = jnp.mean(jnp.stack(overlaps))

    return alpha * loss_nodes + beta * loss_edges + gamma * loss_overlap


if __name__ == "__main__":
    key = jax.random.PRNGKey(0)
    bs, n_nodes, n_edges, n_modules = 2, 16, 32, 3

    k1, k2, k3, k4 = jax.random.split(key, 4)
    x = jax.random.normal(k1, (bs, n_nodes, 2), jnp.float32)
    y = jax.random.normal(k2, (bs, n_nodes, 6), jnp.float32)
    # widths / heights (y[:, :, 4:6]) must be positive for meaningful boxes
    y = y.at[:, :, 4:6].set(jnp.abs(y[:, :, 4:6]) + 0.1)
    edge_attr = jax.random.normal(k3, (n_edges, 2 * n_modules), jnp.float32)
    edge_y = jax.random.normal(k4, (n_edges, 2), jnp.float32)

    # deterministic "parameters" of the module
    alpha, beta, gamma = 1.0, 0.5, 0.25

    out = loss_func(x, y, edge_attr, edge_y, alpha, beta, gamma)
    out = jax.block_until_ready(out)

    ref = jax.block_until_ready(
        _reference_loss(x, y, edge_attr, edge_y, alpha, beta, gamma)
    )
    # slightly looser tolerance than exact: the IoU uses the EUP approx
    # reciprocal (gamma-weighted term carries ~1e-4 relative error).
    assert abs(float(out) - float(ref)) < 2e-3, (float(out), float(ref))

    print("KERNEL_OK")
</pallas_src>

<mosaic_0001>
module attributes {stable_mosaic.version = 11 : i64} {
  func.func @_fused_loss_kernel(%arg0: i32, %arg1: memref<2x16x2xf32, #tpu.memory_space<vmem>>, %arg2: memref<2x16x6xf32, #tpu.memory_space<vmem>>, %arg3: memref<6x32xf32, #tpu.memory_space<vmem>>, %arg4: memref<2x32xf32, #tpu.memory_space<vmem>>, %arg5: memref<1xf32, #tpu.memory_space<smem>>, %arg6: memref<3xf32, #tpu.memory_space<smem>>) attributes {dimension_semantics = [#tpu.dimension_semantics<arbitrary>], iteration_bounds = array<i64: 1>, scalar_prefetch = 0 : i64, scratch_operands = 1 : i64, tpu.core_type = #tpu.core_type<tc>, window_params = [{transform_indices = @transform_0, window_bounds = array<i64: 2, 16, 2>}, {transform_indices = @transform_1, window_bounds = array<i64: 2, 16, 6>}, {pipeline_mode = #tpu.pipeline_mode<synchronous>, transform_indices = @transform_2, window_bounds = array<i64: 6, 32>}, {pipeline_mode = #tpu.pipeline_mode<synchronous>, transform_indices = @transform_3, window_bounds = array<i64: 2, 32>}, {transform_indices = @transform_4, window_bounds = array<i64: 1>}]} {
    %c0_i32 = arith.constant 0 : i32
    %0 = arith.cmpi eq, %arg0, %c0_i32 : i32
    %1 = arith.extui %0 : i1 to i32
    %c0_i32_0 = arith.constant 0 : i32
    %2 = arith.cmpi ne, %1, %c0_i32_0 : i32
    scf.if %2 {
      %cst_20 = arith.constant 0.000000e+00 : f32
      %c0_21 = arith.constant 0 : index
      %91 = memref.load %arg6[%c0_21] : memref<3xf32, #tpu.memory_space<smem>>
      memref.store %cst_20, %arg6[%c0_21] : memref<3xf32, #tpu.memory_space<smem>>
      %cst_22 = arith.constant 0.000000e+00 : f32
      %c1_23 = arith.constant 1 : index
      %92 = memref.load %arg6[%c1_23] : memref<3xf32, #tpu.memory_space<smem>>
      memref.store %cst_22, %arg6[%c1_23] : memref<3xf32, #tpu.memory_space<smem>>
      %cst_24 = arith.constant 0.000000e+00 : f32
      %c0_25 = arith.constant 0 : index
      %93 = memref.load %arg5[%c0_25] : memref<1xf32, #tpu.memory_space<smem>>
      memref.store %cst_24, %arg5[%c0_25] : memref<1xf32, #tpu.memory_space<smem>>
      %c0_26 = arith.constant 0 : index
      %c0_27 = arith.constant 0 : index
      %94 = vector.load %arg3[%c0_26, %c0_27] : memref<6x32xf32, #tpu.memory_space<vmem>>, vector<6x32xf32>
      %c0_28 = arith.constant 0 : index
      %c0_29 = arith.constant 0 : index
      %95 = vector.load %arg4[%c0_28, %c0_29] : memref<2x32xf32, #tpu.memory_space<vmem>>, vector<2x32xf32>
      %96 = tpu.concatenate %95, %95, %95 in 0 : vector<2x32xf32>, vector<2x32xf32>, vector<2x32xf32> -> vector<6x32xf32>
      %97 = arith.subf %94, %96 : vector<6x32xf32>
      %98 = arith.mulf %97, %97 : vector<6x32xf32>
      %99 = vector.shape_cast %98 : vector<6x32xf32> to vector<1x6x32xf32>
      %cst_30 = arith.constant dense<0.000000e+00> : vector<1xf32>
      %100 = vector.multi_reduction <add>, %99, %cst_30 [1, 2] : vector<1x6x32xf32> to vector<1xf32>
      %101 = vector.shape_cast %100 : vector<1xf32> to vector<1x1x1xf32>
      %102 = vector.extract %101[0, 0, 0] : f32 from vector<1x1x1xf32>
      %c2 = arith.constant 2 : index
      %103 = memref.load %arg6[%c2] : memref<3xf32, #tpu.memory_space<smem>>
      memref.store %102, %arg6[%c2] : memref<3xf32, #tpu.memory_space<smem>>
    } else {
    }
    %c0 = arith.constant 0 : index
    %c0_1 = arith.constant 0 : index
    %c0_2 = arith.constant 0 : index
    %3 = vector.load %arg1[%c0, %c0_1, %c0_2] : memref<2x16x2xf32, #tpu.memory_space<vmem>>, vector<2x16x2xf32>
    %c0_3 = arith.constant 0 : index
    %c0_4 = arith.constant 0 : index
    %c0_5 = arith.constant 0 : index
    %4 = vector.load %arg2[%c0_3, %c0_4, %c0_5] : memref<2x16x6xf32, #tpu.memory_space<vmem>>, vector<2x16x6xf32>
    %5 = vector.extract_strided_slice %4 {offsets = [0, 0, 0], sizes = [2, 16, 2], strides = [1, 1, 1]} : vector<2x16x6xf32> to vector<2x16x2xf32>
    %6 = arith.subf %3, %5 : vector<2x16x2xf32>
    %c0_6 = arith.constant 0 : index
    %7 = memref.load %arg6[%c0_6] : memref<3xf32, #tpu.memory_space<smem>>
    %8 = arith.mulf %6, %6 : vector<2x16x2xf32>
    %9 = vector.shape_cast %8 : vector<2x16x2xf32> to vector<1x2x16x2xf32>
    %cst = arith.constant dense<0.000000e+00> : vector<1xf32>
    %10 = vector.multi_reduction <add>, %9, %cst [1, 2, 3] : vector<1x2x16x2xf32> to vector<1xf32>
    %11 = vector.shape_cast %10 : vector<1xf32> to vector<1x1x1x1xf32>
    %12 = vector.extract %11[0, 0, 0, 0] : f32 from vector<1x1x1x1xf32>
    %13 = arith.addf %7, %12 : f32
    %c0_7 = arith.constant 0 : index
    %14 = memref.load %arg6[%c0_7] : memref<3xf32, #tpu.memory_space<smem>>
    memref.store %13, %arg6[%c0_7] : memref<3xf32, #tpu.memory_space<smem>>
    %15 = vector.extract_strided_slice %4 {offsets = [0, 0, 2], sizes = [2, 16, 2], strides = [1, 1, 1]} : vector<2x16x6xf32> to vector<2x16x2xf32>
    %16 = arith.addf %3, %15 : vector<2x16x2xf32>
    %17 = vector.extract_strided_slice %4 {offsets = [0, 0, 4], sizes = [2, 16, 2], strides = [1, 1, 1]} : vector<2x16x6xf32> to vector<2x16x2xf32>
    %cst_8 = arith.constant 5.000000e-01 : f32
    %18 = vector.broadcast %cst_8 : f32 to vector<2x16x2xf32>
    %19 = arith.mulf %17, %18 : vector<2x16x2xf32>
    %20 = arith.subf %16, %19 : vector<2x16x2xf32>
    %21 = arith.addf %16, %19 : vector<2x16x2xf32>
    %22 = tpu.concatenate %20, %21 in 2 : vector<2x16x2xf32>, vector<2x16x2xf32> -> vector<2x16x4xf32>
    %23 = tpu.transpose %22, [0, 2, 1] : vector<2x16x4xf32> -> vector<2x4x16xf32>
    %24 = vector.extract_strided_slice %20 {offsets = [0, 0, 0], sizes = [2, 16, 1], strides = [1, 1, 1]} : vector<2x16x2xf32> to vector<2x16x1xf32>
    %25 = vector.extract_strided_slice %20 {offsets = [0, 0, 1], sizes = [2, 16, 1], strides = [1, 1, 1]} : vector<2x16x2xf32> to vector<2x16x1xf32>
    %26 = vector.extract_strided_slice %21 {offsets = [0, 0, 0], sizes = [2, 16, 1], strides = [1, 1, 1]} : vector<2x16x2xf32> to vector<2x16x1xf32>
    %27 = vector.extract_strided_slice %21 {offsets = [0, 0, 1], sizes = [2, 16, 1], strides = [1, 1, 1]} : vector<2x16x2xf32> to vector<2x16x1xf32>
    %28 = vector.extract_strided_slice %23 {offsets = [0, 0, 0], sizes = [2, 1, 16], strides = [1, 1, 1]} : vector<2x4x16xf32> to vector<2x1x16xf32>
    %29 = vector.extract_strided_slice %23 {offsets = [0, 1, 0], sizes = [2, 1, 16], strides = [1, 1, 1]} : vector<2x4x16xf32> to vector<2x1x16xf32>
    %30 = vector.extract_strided_slice %23 {offsets = [0, 2, 0], sizes = [2, 1, 16], strides = [1, 1, 1]} : vector<2x4x16xf32> to vector<2x1x16xf32>
    %31 = vector.extract_strided_slice %23 {offsets = [0, 3, 0], sizes = [2, 1, 16], strides = [1, 1, 1]} : vector<2x4x16xf32> to vector<2x1x16xf32>
    %32 = vector.broadcast %26 : vector<2x16x1xf32> to vector<2x16x16xf32>
    %33 = vector.broadcast %30 : vector<2x1x16xf32> to vector<2x16x16xf32>
    %34 = arith.minimumf %32, %33 : vector<2x16x16xf32>
    %35 = vector.broadcast %24 : vector<2x16x1xf32> to vector<2x16x16xf32>
    %36 = vector.broadcast %28 : vector<2x1x16xf32> to vector<2x16x16xf32>
    %37 = arith.maximumf %35, %36 : vector<2x16x16xf32>
    %38 = arith.subf %34, %37 : vector<2x16x16xf32>
    %cst_9 = arith.constant 0.000000e+00 : f32
    %39 = vector.broadcast %cst_9 : f32 to vector<2x16x16xf32>
    %40 = arith.maximumf %38, %39 : vector<2x16x16xf32>
    %41 = vector.broadcast %27 : vector<2x16x1xf32> to vector<2x16x16xf32>
    %42 = vector.broadcast %31 : vector<2x1x16xf32> to vector<2x16x16xf32>
    %43 = arith.minimumf %41, %42 : vector<2x16x16xf32>
    %44 = vector.broadcast %25 : vector<2x16x1xf32> to vector<2x16x16xf32>
    %45 = vector.broadcast %29 : vector<2x1x16xf32> to vector<2x16x16xf32>
    %46 = arith.maximumf %44, %45 : vector<2x16x16xf32>
    %47 = arith.subf %43, %46 : vector<2x16x16xf32>
    %cst_10 = arith.constant 0.000000e+00 : f32
    %48 = vector.broadcast %cst_10 : f32 to vector<2x16x16xf32>
    %49 = arith.maximumf %47, %48 : vector<2x16x16xf32>
    %50 = arith.mulf %40, %49 : vector<2x16x16xf32>
    %51 = arith.subf %26, %24 : vector<2x16x1xf32>
    %52 = arith.subf %27, %25 : vector<2x16x1xf32>
    %53 = arith.mulf %51, %52 : vector<2x16x1xf32>
    %54 = arith.subf %30, %28 : vector<2x1x16xf32>
    %55 = arith.subf %31, %29 : vector<2x1x16xf32>
    %56 = arith.mulf %54, %55 : vector<2x1x16xf32>
    %57 = vector.broadcast %53 : vector<2x16x1xf32> to vector<2x16x16xf32>
    %58 = vector.broadcast %56 : vector<2x1x16xf32> to vector<2x16x16xf32>
    %59 = arith.addf %57, %58 : vector<2x16x16xf32>
    %60 = arith.subf %59, %50 : vector<2x16x16xf32>
    %cst_11 = arith.constant 9.99999993E-9 : f32
    %61 = vector.broadcast %cst_11 : f32 to vector<2x16x16xf32>
    %62 = arith.addf %60, %61 : vector<2x16x16xf32>
    %63 = tpu.reciprocal %62 {approx = true} : vector<2x16x16xf32> -> vector<2x16x16xf32>
    %64 = arith.mulf %50, %63 : vector<2x16x16xf32>
    %65 = vector.shape_cast %64 : vector<2x16x16xf32> to vector<1x2x16x16xf32>
    %cst_12 = arith.constant dense<0.000000e+00> : vector<1xf32>
    %66 = vector.multi_reduction <add>, %65, %cst_12 [1, 2, 3] : vector<1x2x16x16xf32> to vector<1xf32>
    %67 = vector.shape_cast %66 : vector<1xf32> to vector<1x1x1x1xf32>
    %68 = vector.extract %67[0, 0, 0, 0] : f32 from vector<1x1x1x1xf32>
    %cst_13 = arith.constant 0.000000e+00 : f32
    %69 = vector.broadcast %cst_13 : f32 to vector<2x16x1xf32>
    %70 = arith.maximumf %51, %69 : vector<2x16x1xf32>
    %cst_14 = arith.constant 0.000000e+00 : f32
    %71 = vector.broadcast %cst_14 : f32 to vector<2x16x1xf32>
    %72 = arith.maximumf %52, %71 : vector<2x16x1xf32>
    %73 = arith.mulf %70, %72 : vector<2x16x1xf32>
    %74 = arith.addf %53, %53 : vector<2x16x1xf32>
    %75 = arith.subf %74, %73 : vector<2x16x1xf32>
    %cst_15 = arith.constant 9.99999993E-9 : f32
    %76 = vector.broadcast %cst_15 : f32 to vector<2x16x1xf32>
    %77 = arith.addf %75, %76 : vector<2x16x1xf32>
    %78 = tpu.reciprocal %77 {approx = true} : vector<2x16x1xf32> -> vector<2x16x1xf32>
    %79 = arith.mulf %73, %78 : vector<2x16x1xf32>
    %c1 = arith.constant 1 : index
    %80 = memref.load %arg6[%c1] : memref<3xf32, #tpu.memory_space<smem>>
    %81 = vector.shape_cast %79 : vector<2x16x1xf32> to vector<1x2x16x1xf32>
    %cst_16 = arith.constant dense<0.000000e+00> : vector<1xf32>
    %82 = vector.multi_reduction <add>, %81, %cst_16 [1, 2, 3] : vector<1x2x16x1xf32> to vector<1xf32>
    %83 = vector.shape_cast %82 : vector<1xf32> to vector<1x1x1x1xf32>
    %84 = vector.extract %83[0, 0, 0, 0] : f32 from vector<1x1x1x1xf32>
    %85 = arith.subf %68, %84 : f32
    %86 = arith.addf %80, %85 : f32
    %c1_17 = arith.constant 1 : index
    %87 = memref.load %arg6[%c1_17] : memref<3xf32, #tpu.memory_space<smem>>
    memref.store %86, %arg6[%c1_17] : memref<3xf32, #tpu.memory_space<smem>>
    %c0_i32_18 = arith.constant 0 : i32
    %88 = arith.cmpi eq, %arg0, %c0_i32_18 : i32
    %89 = arith.extui %88 : i1 to i32
    %c0_i32_19 = arith.constant 0 : i32
    %90 = arith.cmpi ne, %89, %c0_i32_19 : i32
    scf.if %90 {
      %c0_20 = arith.constant 0 : index
      %91 = memref.load %arg6[%c0_20] : memref<3xf32, #tpu.memory_space<smem>>
      %cst_21 = arith.constant 1.562500e-02 : f32
      %92 = arith.mulf %91, %cst_21 : f32
      %c1_22 = arith.constant 1 : index
      %93 = memref.load %arg6[%c1_22] : memref<3xf32, #tpu.memory_space<smem>>
      %cst_23 = arith.constant 0.00208333344 : f32
      %94 = arith.mulf %93, %cst_23 : f32
      %c2 = arith.constant 2 : index
      %95 = memref.load %arg6[%c2] : memref<3xf32, #tpu.memory_space<smem>>
      %cst_24 = arith.constant 0.00520833349 : f32
      %96 = arith.mulf %95, %cst_24 : f32
      %cst_25 = arith.constant 1.000000e+00 : f32
      %97 = arith.mulf %cst_25, %92 : f32
      %cst_26 = arith.constant 5.000000e-01 : f32
      %98 = arith.mulf %cst_26, %96 : f32
      %99 = arith.addf %97, %98 : f32
      %cst_27 = arith.constant 2.500000e-01 : f32
      %100 = arith.mulf %cst_27, %94 : f32
      %101 = arith.addf %99, %100 : f32
      %c0_28 = arith.constant 0 : index
      %102 = memref.load %arg5[%c0_28] : memref<1xf32, #tpu.memory_space<smem>>
      memref.store %101, %arg5[%c0_28] : memref<1xf32, #tpu.memory_space<smem>>
    } else {
    }
    return
  }
  func.func @transform_0(%arg0: i32) -> (i32, i32, i32) {
    %c0_i32 = arith.constant 0 : i32
    %c0_i32_0 = arith.constant 0 : i32
    %c0_i32_1 = arith.constant 0 : i32
    return %arg0, %c0_i32, %c0_i32_0 : i32, i32, i32
  }
  func.func @transform_1(%arg0: i32) -> (i32, i32, i32) {
    %c0_i32 = arith.constant 0 : i32
    %c0_i32_0 = arith.constant 0 : i32
    %c0_i32_1 = arith.constant 0 : i32
    return %arg0, %c0_i32, %c0_i32_0 : i32, i32, i32
  }
  func.func @transform_2(%arg0: i32) -> (i32, i32) {
    %c0_i32 = arith.constant 0 : i32
    %c0_i32_0 = arith.constant 0 : i32
    %c0_i32_1 = arith.constant 0 : i32
    return %c0_i32, %c0_i32_0 : i32, i32
  }
  func.func @transform_3(%arg0: i32) -> (i32, i32) {
    %c0_i32 = arith.constant 0 : i32
    %c0_i32_0 = arith.constant 0 : i32
    %c0_i32_1 = arith.constant 0 : i32
    return %c0_i32, %c0_i32_0 : i32, i32
  }
  func.func @transform_4(%arg0: i32) -> i32 {
    %c0_i32 = arith.constant 0 : i32
    %c0_i32_0 = arith.constant 0 : i32
    return %c0_i32 : i32
  }
}

</mosaic_0001>

<llo_original>
// kernel: tpu_custom_call.1
$region0: #{tpu_custom_call.1}
  #allocation0 [shape = 'u32[]', space=smem, size = 0x4, offset = 0x4, fixed_abs, tag = 'smem constant byte address 0x4 - core index']
  #allocation1 [shape = 'u32[144,128]{1,0:T(1,128)}', space=vmem, size = 0x12000, scoped, tag = 'internal scratch']
  #allocation2 [shape = 'f32[3]{0:T(128)}', space=smem, size = 0x200, scoped, tag = 'scratch operand']
  %s0 = inlined_call_operand.vmem [shape: f32[2,16,2], index: 0, kind: input, shape index: {}]
  %s1 = inlined_call_operand.vmem [shape: f32[2,16,6], index: 1, kind: input, shape index: {}]
  %s2 = inlined_call_operand.vmem [shape: f32[6,32], index: 2, kind: input, shape index: {}]
  %s3 = inlined_call_operand.vmem [shape: f32[2,32], index: 3, kind: input, shape index: {}]
  %s4 = inlined_call_operand.hbm [shape: f32[1], index: 4, kind: output, shape index: {}]
  %s5 = sld [smem:[#allocation0]]
  $region34: #{tpu_custom_call.1} parent=0
    _
  %s7 = ssub.s32 1, %s5
  %s8 = scalar_select 0, %s7, %s5
  $region1: #{tpu_custom_call.1} parent=0
    #allocation3 [shape = 'u8[512]{0}', space=smem, size = 0x200, scoped, tag = 'output window, operand 0, single buffered']
    #allocation4 [shape = 's32[1]{0}', space=sflag, size = 0x4, scoped, tag = 'scoped memory for tpu_custom_call.1']
    %9 = vsyncpa [#allocation4], 0
    // Predicated region
    $region2: #{tpu_custom_call.1} parent=1 // pred_check
      _
    $region3: #{tpu_custom_call.1} parent=1 // pred_check_branch
      %11 = sbr.rel (0) target = $region5
    $region4: #{tpu_custom_call.1} parent=1 // pred_region
      _
    $region5: #{tpu_custom_call.1} parent=1 // pred_fallthru
      _
    // Predicated region
    $region6: #{tpu_custom_call.1} parent=1 // pred_check
      _
    $region7: #{tpu_custom_call.1} parent=1 // pred_check_branch
      %13 = sbr.rel (0) target = $region9
    $region8: #{tpu_custom_call.1} parent=1 // pred_region
      _
    $region9: #{tpu_custom_call.1} parent=1 // pred_fallthru
      _
    // Predicated region
    $region10: #{tpu_custom_call.1} parent=1 // pred_check
      _
    $region11: #{tpu_custom_call.1} parent=1 // pred_check_branch
      %15 = sbr.rel (0) target = $region13
    $region12: #{tpu_custom_call.1} parent=1 // pred_region
      _
    $region13: #{tpu_custom_call.1} parent=1 // pred_fallthru
      _
    // Predicated region
    $region14: #{tpu_custom_call.1} parent=1 // pred_check
      _
    $region15: #{tpu_custom_call.1} parent=1 // pred_check_branch
      %17 = sbr.rel (0) target = $region17
    $region16: #{tpu_custom_call.1} parent=1 // pred_region
      _
    $region17: #{tpu_custom_call.1} parent=1 // pred_fallthru
      _
    %p18 = scmp.eq.s32.totalorder 0, 0
    // Predicated region
    $region18: #{tpu_custom_call.1} parent=1 // pred_check
      %p19 = pneg %p18
    $region19: #{tpu_custom_call.1} parent=1 // pred_check_branch
      %21 = sbr.rel (%p19) target = $region21
    $region20: #{tpu_custom_call.1} parent=1 // pred_region
      %s22 = scalar_lea.smem [#allocation2], 0
      %23 = sst [smem:[%s22]] 0.0
      %s24 = scalar_lea.smem [#allocation2], 1
      %25 = sst [smem:[%s24]] 0.0
      %s26 = scalar_lea.smem [#allocation3], 0
      %27 = sst [smem:[%s26]] 0.0
      %v28 = vld [vmem:[%s2] sm:$0x3f]
      %v29 = vld [vmem:[%s3] sm:$0x3]
      %v31 = vrot.slane %v29, 6
      %v33 = vrot.slane %v29, 4
      %vm35 = vcmask 1041408
      %v36 = vsel %vm35, %v29, %v31
      %vm37 = vcmask 1043456
      %v38 = vsel %vm37, %v36, %v33
      %v39 = vsub.f32 %v28, %v38
      %v40 = vmul.f32 %v39, %v39
      %vm41 = vcmask 259072
      %v42 = vsel %vm41, %v40, 0.0
      %43 = vadd.xlane.f32.xlu0 %v42
      %v44 = vpop.xlane.xlu0 %43
      %v45 = vrot.slane %v44, 4
      %v46 = vadd.f32 %v44, %v45
      %v47 = vrot.slane %v46, 2
      %v48 = vadd.f32 %v46, %v47
      %v49 = vrot.slane %v48, 1
      %v50 = vadd.f32 %v48, %v49
      %s51 = vtos %v50
      %s52 = scalar_lea.smem [#allocation2], 2
      %53 = sst [smem:[%s52]] %s51
    $region21: #{tpu_custom_call.1} parent=1 // pred_fallthru
      _
    %v54 = vld [vmem:[%s0] sm:$0xff]
    %v55 = vld [vmem:[%s0 + $0x8] sm:$0xff]
    %v56 = vld [vmem:[%s0 + $0x10] sm:$0xff]
    %v57 = vld [vmem:[%s0 + $0x18] sm:$0xff]
    %v58 = vld [vmem:[%s1] sm:$0xff]
    %v59 = vld [vmem:[%s1 + $0x8] sm:$0xff]
    %v60 = vld [vmem:[%s1 + $0x10] sm:$0xff]
    %v61 = vld [vmem:[%s1 + $0x18] sm:$0xff]
    %v62 = vsub.f32 %v54, %v58
    %v63 = vsub.f32 %v55, %v59
    %v64 = vsub.f32 %v56, %v60
    %v65 = vsub.f32 %v57, %v61
    %s66 = sld [smem:[#allocation2]]
    %v67 = vmul.f32 %v62, %v62
    %v68 = vmul.f32 %v63, %v63
    %v69 = vmul.f32 %v64, %v64
    %v70 = vmul.f32 %v65, %v65
    %vm71 = vcmask 15360
    %v72 = vsel %vm71, %v67, 0.0
    %v73 = vsel %vm71, %v68, 0.0
    %v74 = vadd.f32 %v72, %v73
    %v75 = vsel %vm71, %v69, 0.0
    %v76 = vadd.f32 %v74, %v75
    %v77 = vsel %vm71, %v70, 0.0
    %v78 = vadd.f32 %v76, %v77
    %79 = vadd.xlane.f32.xlu0 %v78
    %v80 = vpop.xlane.xlu0 %79
    %v81 = vrot.slane %v80, 4
    %v82 = vadd.f32 %v80, %v81
    %v83 = vrot.slane %v82, 2
    %v84 = vadd.f32 %v82, %v83
    %v85 = vrot.slane %v84, 1
    %v86 = vadd.f32 %v84, %v85
    %s87 = vtos %v86
    %s88 = sadd.f32 %s66, %s87
    %s89 = scalar_lea.smem [#allocation2], 0
    %90 = sst [smem:[%s89]] %s88
    %95 = vrot.lane.b32.xlu0 %v58, 126
    %v96 = vpop.permute.xlu0 %95
    %97 = vrot.lane.b32.xlu0 %v59, 126
    %v98 = vpop.permute.xlu0 %97
    %99 = vrot.lane.b32.xlu0 %v60, 126
    %v100 = vpop.permute.xlu0 %99
    %101 = vrot.lane.b32.xlu0 %v61, 126
    %v102 = vpop.permute.xlu0 %101
    %v107 = vadd.f32 %v54, %v96
    %v108 = vadd.f32 %v55, %v98
    %v109 = vadd.f32 %v56, %v100
    %v110 = vadd.f32 %v57, %v102
    %v111 = vmul.f32 %v58, 0.5
    %v112 = vmul.f32 %v59, 0.5
    %v113 = vmul.f32 %v60, 0.5
    %v114 = vmul.f32 %v61, 0.5
    %119 = vrot.lane.b32.xlu0 %v111, 124
    %v120 = vpop.permute.xlu0 %119
    %121 = vrot.lane.b32.xlu0 %v112, 124
    %v122 = vpop.permute.xlu0 %121
    %123 = vrot.lane.b32.xlu0 %v113, 124
    %v124 = vpop.permute.xlu0 %123
    %125 = vrot.lane.b32.xlu0 %v114, 124
    %v126 = vpop.permute.xlu0 %125
    %v131 = vsub.f32 %v107, %v120
    %v132 = vsub.f32 %v108, %v122
    %v133 = vsub.f32 %v109, %v124
    %v134 = vsub.f32 %v110, %v126
    %v135 = vadd.f32 %v107, %v120
    %v136 = vadd.f32 %v108, %v122
    %v137 = vadd.f32 %v109, %v124
    %v138 = vadd.f32 %v110, %v126
    %143 = vrot.lane.b32.xlu0 %v135, 2
    %v144 = vpop.permute.xlu0 %143
    %145 = vrot.lane.b32.xlu0 %v136, 2
    %v146 = vpop.permute.xlu0 %145
    %147 = vrot.lane.b32.xlu0 %v137, 2
    %v148 = vpop.permute.xlu0 %147
    %149 = vrot.lane.b32.xlu0 %v138, 2
    %v150 = vpop.permute.xlu0 %149
    %v155 = vsel %vm71, %v131, %v144
    %v156 = vsel %vm71, %v132, %v146
    %v157 = vsel %vm71, %v133, %v148
    %v158 = vsel %vm71, %v134, %v150
    %159 = vxpose.xlu0.b32.start [1/16] %v155, 128
    %160 = vxpose.xlu0.b32.cont [2/16] %v156, 128
    %161 = vxpose.xlu0.b32.cont [3/16] 0.0, 128
    %162 = vxpose.xlu0.b32.cont [4/16] 0.0, 128
    %163 = vxpose.xlu0.b32.cont [5/16] 0.0, 128
    %164 = vxpose.xlu0.b32.cont [6/16] 0.0, 128
    %165 = vxpose.xlu0.b32.cont [7/16] 0.0, 128
    %166 = vxpose.xlu0.b32.cont [8/16] 0.0, 128
    %167 = vxpose.xlu0.b32.cont [9/16] 0.0, 128
    %168 = vxpose.xlu0.b32.cont [10/16] 0.0, 128
    %169 = vxpose.xlu0.b32.cont [11/16] 0.0, 128
    %170 = vxpose.xlu0.b32.cont [12/16] 0.0, 128
    %171 = vxpose.xlu0.b32.cont [13/16] 0.0, 128
    %172 = vxpose.xlu0.b32.cont [14/16] 0.0, 128
    %173 = vxpose.xlu0.b32.cont [15/16] 0.0, 128
    %174 = vxpose.xlu0.b32.end [16/16] 0.0, 128
    %v175 = vpop.trf.xlu0
    %v176 = vpop.trf.xlu0
    %v177 = vpop.trf.xlu0
    %v178 = vpop.trf.xlu0
    %v179 = vpop.trf.xlu0
    %v180 = vpop.trf.xlu0
    %v181 = vpop.trf.xlu0
    %v182 = vpop.trf.xlu0
    %v183 = vpop.trf.xlu0
    %v184 = vpop.trf.xlu0
    %v185 = vpop.trf.xlu0
    %v186 = vpop.trf.xlu0
    %v187 = vpop.trf.xlu0
    %v188 = vpop.trf.xlu0
    %v189 = vpop.trf.xlu0
    %v190 = vpop.trf.xlu0
    %191 = vxpose.xlu0.b32.start [1/16] %v157, 128
    %192 = vxpose.xlu0.b32.cont [2/16] %v158, 128
    %193 = vxpose.xlu0.b32.cont [3/16] 0.0, 128
    %194 = vxpose.xlu0.b32.cont [4/16] 0.0, 128
    %195 = vxpose.xlu0.b32.cont [5/16] 0.0, 128
    %196 = vxpose.xlu0.b32.cont [6/16] 0.0, 128
    %197 = vxpose.xlu0.b32.cont [7/16] 0.0, 128
    %198 = vxpose.xlu0.b32.cont [8/16] 0.0, 128
    %199 = vxpose.xlu0.b32.cont [9/16] 0.0, 128
    %200 = vxpose.xlu0.b32.cont [10/16] 0.0, 128
    %201 = vxpose.xlu0.b32.cont [11/16] 0.0, 128
    %202 = vxpose.xlu0.b32.cont [12/16] 0.0, 128
    %203 = vxpose.xlu0.b32.cont [13/16] 0.0, 128
    %204 = vxpose.xlu0.b32.cont [14/16] 0.0, 128
    %205 = vxpose.xlu0.b32.cont [15/16] 0.0, 128
    %206 = vxpose.xlu0.b32.end [16/16] 0.0, 128
    %v207 = vpop.trf.xlu0
    %v208 = vpop.trf.xlu0
    %v209 = vpop.trf.xlu0
    %v210 = vpop.trf.xlu0
    %v211 = vpop.trf.xlu0
    %v212 = vpop.trf.xlu0
    %v213 = vpop.trf.xlu0
    %v214 = vpop.trf.xlu0
    %v215 = vpop.trf.xlu0
    %v216 = vpop.trf.xlu0
    %v217 = vpop.trf.xlu0
    %v218 = vpop.trf.xlu0
    %v219 = vpop.trf.xlu0
    %v220 = vpop.trf.xlu0
    %v221 = vpop.trf.xlu0
    %v222 = vpop.trf.xlu0
    %223 = vset.pattern.permute.xlu0 0
    %224 = vperm.xlu0 %223, %v135
    %v225 = vpop.permute.xlu0 %224
    %227 = vset.pattern.permute.xlu0 0
    %228 = vperm.xlu0 %227, %v136
    %v229 = vpop.permute.xlu0 %228
    %231 = vset.pattern.permute.xlu0 0
    %232 = vperm.xlu0 %231, %v137
    %v233 = vpop.permute.xlu0 %232
    %235 = vset.pattern.permute.xlu0 0
    %236 = vperm.xlu0 %235, %v138
    %v237 = vpop.permute.xlu0 %236
    %v239 = vlaneseq
    %v240 = vshrl.u32 %v239, 7
    %v241 = vsub.s32 2, %v240
    %v242 = vrot.slane %v175, %v241
    %v243 = vlaneseq
    %v244 = vshrl.u32 %v243, 7
    %v245 = vsub.s32 2, %v244
    %v246 = vrot.slane %v207, %v245
    %v247 = vmin.f32 %v225, %v242
    %v248 = vmin.f32 %v229, %v242
    %v249 = vmin.f32 %v233, %v246
    %v250 = vmin.f32 %v237, %v246
    %252 = vset.pattern.permute.xlu0 0
    %253 = vperm.xlu0 %252, %v131
    %v254 = vpop.permute.xlu0 %253
    %257 = vset.pattern.permute.xlu0 0
    %258 = vperm.xlu0 %257, %v132
    %v259 = vpop.permute.xlu0 %258
    %262 = vset.pattern.permute.xlu0 0
    %263 = vperm.xlu0 %262, %v133
    %v264 = vpop.permute.xlu0 %263
    %267 = vset.pattern.permute.xlu0 0
    %268 = vperm.xlu0 %267, %v134
    %v269 = vpop.permute.xlu0 %268
    %v271 = vlaneseq
    %v272 = vshrl.u32 %v271, 7
    %v273 = vsub.s32 0, %v272
    %v274 = vrot.slane %v175, %v273
    %v275 = vlaneseq
    %v276 = vshrl.u32 %v275, 7
    %v277 = vsub.s32 0, %v276
    %v278 = vrot.slane %v207, %v277
    %v279 = vmax.f32 %v254, %v274
    %v280 = vmax.f32 %v259, %v274
    %v281 = vmax.f32 %v264, %v278
    %v282 = vmax.f32 %v269, %v278
    %v283 = vsub.f32 %v247, %v279
    %v284 = vsub.f32 %v248, %v280
    %v285 = vsub.f32 %v249, %v281
    %v286 = vsub.f32 %v250, %v282
    %v287 = vmax.f32 %v283, 0.0
    %v288 = vmax.f32 %v284, 0.0
    %v289 = vmax.f32 %v285, 0.0
    %v290 = vmax.f32 %v286, 0.0
    %291 = vset.pattern.permute.xlu0 1
    %292 = vperm.xlu0 %291, %v135
    %v293 = vpop.permute.xlu0 %292
    %295 = vset.pattern.permute.xlu0 1
    %296 = vperm.xlu0 %295, %v136
    %v297 = vpop.permute.xlu0 %296
    %299 = vset.pattern.permute.xlu0 1
    %300 = vperm.xlu0 %299, %v137
    %v301 = vpop.permute.xlu0 %300
    %303 = vset.pattern.permute.xlu0 1
    %304 = vperm.xlu0 %303, %v138
    %v305 = vpop.permute.xlu0 %304
    %v307 = vlaneseq
    %v308 = vshrl.u32 %v307, 7
    %v309 = vsub.s32 3, %v308
    %v310 = vrot.slane %v175, %v309
    %v311 = vlaneseq
    %v312 = vshrl.u32 %v311, 7
    %v313 = vsub.s32 3, %v312
    %v314 = vrot.slane %v207, %v313
    %v315 = vmin.f32 %v293, %v310
    %v316 = vmin.f32 %v297, %v310
    %v317 = vmin.f32 %v301, %v314
    %v318 = vmin.f32 %v305, %v314
    %319 = vset.pattern.permute.xlu0 1
    %320 = vperm.xlu0 %319, %v131
    %v321 = vpop.permute.xlu0 %320
    %323 = vset.pattern.permute.xlu0 1
    %324 = vperm.xlu0 %323, %v132
    %v325 = vpop.permute.xlu0 %324
    %327 = vset.pattern.permute.xlu0 1
    %328 = vperm.xlu0 %327, %v133
    %v329 = vpop.permute.xlu0 %328
    %331 = vset.pattern.permute.xlu0 1
    %332 = vperm.xlu0 %331, %v134
    %v333 = vpop.permute.xlu0 %332
    %v335 = vlaneseq
    %v336 = vshrl.u32 %v335, 7
    %v337 = vsub.s32 1, %v336
    %v338 = vrot.slane %v175, %v337
    %v339 = vlaneseq
    %v340 = vshrl.u32 %v339, 7
    %v341 = vsub.s32 1, %v340
    %v342 = vrot.slane %v207, %v341
    %v343 = vmax.f32 %v321, %v338
    %v344 = vmax.f32 %v325, %v338
    %v345 = vmax.f32 %v329, %v342
    %v346 = vmax.f32 %v333, %v342
    %v347 = vsub.f32 %v315, %v343
    %v348 = vsub.f32 %v316, %v344
    %v349 = vsub.f32 %v317, %v345
    %v350 = vsub.f32 %v318, %v346
    %v351 = vmax.f32 %v347, 0.0
    %v352 = vmax.f32 %v348, 0.0
    %v353 = vmax.f32 %v349, 0.0
    %v354 = vmax.f32 %v350, 0.0
    %v355 = vmul.f32 %v287, %v351
    %v356 = vmul.f32 %v288, %v352
    %v357 = vmul.f32 %v289, %v353
    %v358 = vmul.f32 %v290, %v354
    %v359 = vsub.f32 %v135, %v131
    %v360 = vsub.f32 %v136, %v132
    %v361 = vsub.f32 %v137, %v133
    %v362 = vsub.f32 %v138, %v134
    %367 = vrot.lane.b32.xlu0 %v359, 127
    %v368 = vpop.permute.xlu0 %367
    %369 = vrot.lane.b32.xlu0 %v360, 127
    %v370 = vpop.permute.xlu0 %369
    %371 = vrot.lane.b32.xlu0 %v361, 127
    %v372 = vpop.permute.xlu0 %371
    %373 = vrot.lane.b32.xlu0 %v362, 127
    %v374 = vpop.permute.xlu0 %373
    %v379 = vmul.f32 %v359, %v368
    %v380 = vmul.f32 %v360, %v370
    %v381 = vmul.f32 %v361, %v372
    %v382 = vmul.f32 %v362, %v374
    %v385 = vrot.slane %v175, 6
    %v386 = vrot.slane %v207, 6
    %v389 = vsub.f32 %v175, %v385
    %v390 = vsub.f32 %v207, %v386
    %v393 = vrot.slane %v389, 1
    %v394 = vrot.slane %v390, 1
    %v397 = vmul.f32 %v389, %v393
    %v398 = vmul.f32 %v390, %v394
    %400 = vset.pattern.permute.xlu0 0
    %401 = vperm.xlu0 %400, %v379
    %v402 = vpop.permute.xlu0 %401
    %405 = vset.pattern.permute.xlu0 0
    %406 = vperm.xlu0 %405, %v380
    %v407 = vpop.permute.xlu0 %406
    %410 = vset.pattern.permute.xlu0 0
    %411 = vperm.xlu0 %410, %v381
    %v412 = vpop.permute.xlu0 %411
    %415 = vset.pattern.permute.xlu0 0
    %416 = vperm.xlu0 %415, %v382
    %v417 = vpop.permute.xlu0 %416
    %v419 = vlaneseq
    %v420 = vshrl.u32 %v419, 7
    %v421 = vsub.s32 2, %v420
    %v422 = vrot.slane %v397, %v421
    %v423 = vlaneseq
    %v424 = vshrl.u32 %v423, 7
    %v425 = vsub.s32 2, %v424
    %v426 = vrot.slane %v398, %v425
    %v427 = vadd.f32 %v402, %v422
    %v428 = vadd.f32 %v407, %v422
    %v429 = vadd.f32 %v412, %v426
    %v430 = vadd.f32 %v417, %v426
    %v431 = vsub.f32 %v427, %v355
    %v432 = vsub.f32 %v428, %v356
    %v433 = vsub.f32 %v429, %v357
    %v434 = vsub.f32 %v430, %v358
    %v435 = vadd.f32 %v431, 1e-08
    %v436 = vadd.f32 %v432, 1e-08
    %v437 = vadd.f32 %v433, 1e-08
    %v438 = vadd.f32 %v434, 1e-08
    %v439 = vrcp.pop %v435
    %v440 = vrcp.pop %v436
    %v441 = vrcp.pop %v437
    %v442 = vrcp.pop %v438
    %v443 = vmul.f32 %v355, %v439
    %v444 = vmul.f32 %v356, %v440
    %v445 = vmul.f32 %v357, %v441
    %v446 = vmul.f32 %v358, %v442
    %vm447 = vcmask 130048
    %v448 = vsel %vm447, %v443, 0.0
    %v449 = vsel %vm447, %v444, 0.0
    %v450 = vadd.f32 %v448, %v449
    %v451 = vsel %vm447, %v445, 0.0
    %v452 = vadd.f32 %v450, %v451
    %v453 = vsel %vm447, %v446, 0.0
    %v454 = vadd.f32 %v452, %v453
    %455 = vadd.xlane.f32.xlu0 %v454
    %v456 = vpop.xlane.xlu0 %455
    %v457 = vrot.slane %v456, 4
    %v458 = vadd.f32 %v456, %v457
    %v459 = vrot.slane %v458, 2
    %v460 = vadd.f32 %v458, %v459
    %v461 = vrot.slane %v460, 1
    %v462 = vadd.f32 %v460, %v461
    %s463 = vtos %v462
    %v464 = vmax.f32 %v359, 0.0
    %v465 = vmax.f32 %v360, 0.0
    %v466 = vmax.f32 %v361, 0.0
    %v467 = vmax.f32 %v362, 0.0
    %472 = vrot.lane.b32.xlu0 %v464, 127
    %v473 = vpop.permute.xlu0 %472
    %474 = vrot.lane.b32.xlu0 %v465, 127
    %v475 = vpop.permute.xlu0 %474
    %476 = vrot.lane.b32.xlu0 %v466, 127
    %v477 = vpop.permute.xlu0 %476
    %478 = vrot.lane.b32.xlu0 %v467, 127
    %v479 = vpop.permute.xlu0 %478
    %v484 = vmul.f32 %v464, %v473
    %v485 = vmul.f32 %v465, %v475
    %v486 = vmul.f32 %v466, %v477
    %v487 = vmul.f32 %v467, %v479
    %v488 = vadd.f32 %v379, %v379
    %v489 = vadd.f32 %v380, %v380
    %v490 = vadd.f32 %v381, %v381
    %v491 = vadd.f32 %v382, %v382
    %v492 = vsub.f32 %v488, %v484
    %v493 = vsub.f32 %v489, %v485
    %v494 = vsub.f32 %v490, %v486
    %v495 = vsub.f32 %v491, %v487
    %v496 = vadd.f32 %v492, 1e-08
    %v497 = vadd.f32 %v493, 1e-08
    %v498 = vadd.f32 %v494, 1e-08
    %v499 = vadd.f32 %v495, 1e-08
    %v500 = vrcp.pop %v496
    %v501 = vrcp.pop %v497
    %v502 = vrcp.pop %v498
    %v503 = vrcp.pop %v499
    %v504 = vmul.f32 %v484, %v500
    %v505 = vmul.f32 %v485, %v501
    %v506 = vmul.f32 %v486, %v502
    %v507 = vmul.f32 %v487, %v503
    %s508 = sld [smem:[#allocation2 + $0x1]]
    %vm509 = vcmask 7168
    %v510 = vsel %vm509, %v504, 0.0
    %v511 = vsel %vm509, %v505, 0.0
    %v512 = vadd.f32 %v510, %v511
    %v513 = vsel %vm509, %v506, 0.0
    %v514 = vadd.f32 %v512, %v513
    %v515 = vsel %vm509, %v507, 0.0
    %v516 = vadd.f32 %v514, %v515
    %517 = vadd.xlane.f32.xlu0 %v516
    %v518 = vpop.xlane.xlu0 %517
    %v519 = vrot.slane %v518, 4
    %v520 = vadd.f32 %v518, %v519
    %v521 = vrot.slane %v520, 2
    %v522 = vadd.f32 %v520, %v521
    %v523 = vrot.slane %v522, 1
    %v524 = vadd.f32 %v522, %v523
    %s525 = vtos %v524
    %s526 = ssub.f32 %s463, %s525
    %s527 = sadd.f32 %s508, %s526
    %s528 = scalar_lea.smem [#allocation2], 1
    %529 = sst [smem:[%s528]] %s527
    // Predicated region
    $region22: #{tpu_custom_call.1} parent=1 // pred_check
      %p530 = pneg %p18
    $region23: #{tpu_custom_call.1} parent=1 // pred_check_branch
      %532 = sbr.rel (%p530) target = $region25
    $region24: #{tpu_custom_call.1} parent=1 // pred_region
      %s533 = sld [smem:[#allocation2]]
      %s534 = smul.f32 %s533, 0.015625
      %s535 = sld [smem:[#allocation2 + $0x1]]
      %s536 = smul.f32 %s535, 0.0020833334
      %s537 = sld [smem:[#allocation2 + $0x2]]
      %s538 = smul.f32 %s537, 0.0052083335
      %s539 = smul.f32 %s538, 0.5
      %s540 = sadd.f32 %s534, %s539
      %s541 = smul.f32 %s536, 0.25
      %s542 = sadd.f32 %s540, %s541
      %s543 = scalar_lea.smem [#allocation3], 0
      %544 = sst [smem:[%s543]] %s542
    $region25: #{tpu_custom_call.1} parent=1 // pred_fallthru
      _
    // Predicated region
    $region26: #{tpu_custom_call.1} parent=1 // pred_check
      _
    $region27: #{tpu_custom_call.1} parent=1 // pred_check_branch
      %546 = sbr.rel (0) target = $region29
    $region28: #{tpu_custom_call.1} parent=1 // pred_region
      %s548 = ssub.s32 16, 16
      %549 = vsyncadd [#allocation4], %s548
      %552 = dma.smem_to_hbm [#allocation3], 16, %s4, [#allocation4]
    $region29: #{tpu_custom_call.1} parent=1 // pred_fallthru
      _
    // Predicated region
    $region30: #{tpu_custom_call.1} parent=1 // pred_check
      _
    $region31: #{tpu_custom_call.1} parent=1 // pred_check_branch
      %554 = sbr.rel (0) target = $region33
    $region32: #{tpu_custom_call.1} parent=1 // pred_region
      %555 = dma.done [#allocation4], 16
    $region33: #{tpu_custom_call.1} parent=1 // pred_fallthru
      _
    %556 = sfence
    %557 = vsyncpa [#allocation4], 1

</llo_original>
